<compile_context>
chip_gen: v7x
topology: tpu7x:2x2x1
jax: 0.10.0
libtpu: 0.0.40
codegen_flags: <defaults>
</compile_context>

<pallas_src>
import jax
import jax.numpy as jnp
from jax import lax
from jax.experimental import pallas as pl
from jax.experimental.pallas import tpu as pltpu


def rnn_kernel(ids_ref, h0_ref, w_comb_ref, w_hh_ref, b_ih_ref, b_hh_ref,
               w_fc_ref, b_fc_ref, logits_ref, h_out_ref, hs_ref):
    """Full forward pass for one batch of sequences.

    ids_ref    : (seq*batch, 1) int32, TIME-major flat token ids (row = t*batch + b)
    h0_ref     : (batch, hidden)  f32, initial hidden state
    w_comb_ref : (vocab, hidden)  f32, pre-folded embed @ W_ih
    w_hh_ref   : (hidden, hidden) f32  (transposed torch weight_hh_l0)
    b_ih_ref   : (1, hidden)      f32
    b_hh_ref   : (1, hidden)      f32
    w_fc_ref   : (hidden, vocab)  f32  (transposed torch fc.weight)
    b_fc_ref   : (1, vocab)       f32
    logits_ref : (seq*batch, vocab) f32 output, TIME-major flat slab
    h_out_ref  : (batch, hidden)    f32 output (final hidden state)
    hs_ref     : (seq*batch, hidden) f32 scratch (time-major hidden states)
    """
    batch, hidden = h0_ref.shape
    seq_batch = hs_ref.shape[0]
    seq_len = seq_batch // batch
    vocab = w_comb_ref.shape[0]

    # --- (1) Fused embedding lookup + input projection ------------------------
    # One-hot row-select against the pre-folded W_comb = embed @ W_ih (one MXU
    # pass instead of two, no (S*B, embed) intermediate).
    # NOTE: ids outside [0, vocab) silently select a zero row (torch would raise);
    # callers must guarantee in-range ids.
    # TODO(synk): at realistic vocab sizes replace the one-hot compare with a
    # scalar-prefetch gather of W_comb rows (PrefetchScalarGridSpec).
    ids = ids_ref[...]                                              # (S*B, 1) i32
    col = lax.broadcasted_iota(jnp.int32, (seq_batch, vocab), 1)    # (S*B, V)
    onehot = (ids == col).astype(jnp.float32)                       # exact row select
    b_rnn = b_ih_ref[...] + b_hh_ref[...]                           # (1, H), added once
    xw = (jnp.dot(onehot, w_comb_ref[...],
                  preferred_element_type=jnp.float32)
          + b_rnn)                                                  # (S*B, H) traced value

    # --- (2) Serial recurrence, fully unrolled (static, small seq_len) --------
    # Only h @ W_hh (MXU) + add + tanh (EUP) sit on the serial chain; the x_t
    # value slices do not depend on h, so the scheduler hoists them off it.
    # TODO(synk): hold W_hh in MXU weight registers across the loop via
    # pltpu.matmul_push_rhs / matmul_acc_lhs / matmul_pop once acc-address
    # semantics are verified for a sub-tile (32x32) RHS on v5e/v6e (MRF) vs v7x (MRB).
    # TODO(synk): for realistic seq_len switch to lax.fori_loop(..., unroll=4..8).
    w_hh = w_hh_ref[...]
    h = h0_ref[...]                                                 # (B, H)
    for t in range(seq_len):
        x_t = xw[t * batch:(t + 1) * batch, :]                      # (B, H) value slice
        h = jnp.tanh(x_t + jnp.dot(h, w_hh,
                                   preferred_element_type=jnp.float32))
        hs_ref[t * batch:(t + 1) * batch, :] = h                    # stage (off serial chain)
    h_out_ref[...] = h

    # --- (3) Bulk output projection: ONE matmul, ONE flat store ---------------
    logits_ref[...] = (jnp.dot(hs_ref[...], w_fc_ref[...],
                               preferred_element_type=jnp.float32)
                       + b_fc_ref[...])                             # (S*B, V)


@jax.jit
def simple_rnn_forward(x_ids, h0, params):
    """x_ids: (batch, seq) int32; h0: (1, batch, hidden) f32."""
    batch, seq = x_ids.shape
    hidden = params["w_hh"].shape[0]
    vocab = params["w_fc"].shape[1]

    # Layout glue only: time-major flat ids (seq*batch int32s).
    ids_tm = jnp.transpose(x_ids).reshape(seq * batch, 1).astype(jnp.int32)
    h0_2d = h0[0]                                                   # (batch, hidden)

    # Parameter-only fold (free, constant across calls): embedding + input proj.
    w_comb = jnp.dot(params["embed"], params["w_ih"],
                     preferred_element_type=jnp.float32)            # (vocab, hidden)

    vmem = pl.BlockSpec(memory_space=pltpu.MemorySpace.VMEM)

    logits_tm, h_new = pl.pallas_call(
        rnn_kernel,
        out_shape=(
            jax.ShapeDtypeStruct((seq * batch, vocab), jnp.float32),
            jax.ShapeDtypeStruct((batch, hidden), jnp.float32),
        ),
        in_specs=[vmem] * 8,
        out_specs=(vmem, vmem),
        scratch_shapes=[
            pltpu.VMEM((seq * batch, hidden), jnp.float32),   # hs staging
        ],
        compiler_params=pltpu.CompilerParams(
            vmem_limit_bytes=32 * 1024 * 1024),
    )(ids_tm, h0_2d, w_comb,
      params["w_hh"], params["b_ih"], params["b_hh"],
      params["w_fc"], params["b_fc"])

    # Batch-first view of the time-major slab (64 floats; free in the wrapper).
    logits = jnp.transpose(logits_tm.reshape(seq, batch, vocab), (1, 0, 2))
    return logits, h_new[None]                                      # (1, batch, hidden)


def init_params(key, vocab_size, embedding_dim, hidden_size):
    ks = jax.random.split(key, 7)
    scale_rnn = 1.0 / jnp.sqrt(hidden_size)
    scale_fc = 1.0 / jnp.sqrt(hidden_size)
    return {
        # nn.Embedding(vocab_size, embedding_dim): weight (vocab, embed) ~ N(0,1)
        "embed": jax.random.normal(ks[0], (vocab_size, embedding_dim), jnp.float32),
        # nn.RNN weights, stored pre-transposed for x @ W layout:
        "w_ih": jax.random.uniform(ks[1], (embedding_dim, hidden_size), jnp.float32,
                                   -scale_rnn, scale_rnn),
        "w_hh": jax.random.uniform(ks[2], (hidden_size, hidden_size), jnp.float32,
                                   -scale_rnn, scale_rnn),
        "b_ih": jax.random.uniform(ks[3], (1, hidden_size), jnp.float32,
                                   -scale_rnn, scale_rnn),
        "b_hh": jax.random.uniform(ks[4], (1, hidden_size), jnp.float32,
                                   -scale_rnn, scale_rnn),
        # nn.Linear(hidden, vocab), stored pre-transposed:
        "w_fc": jax.random.uniform(ks[5], (hidden_size, vocab_size), jnp.float32,
                                   -scale_fc, scale_fc),
        "b_fc": jax.random.uniform(ks[6], (1, vocab_size), jnp.float32,
                                   -scale_fc, scale_fc),
    }


def reference_forward(x_ids, h0, params):
    """Pure-JAX reference of the same forward pass (for a sanity check)."""
    emb = jnp.take(params["embed"], x_ids, axis=0)       # (batch, seq, embed)
    b = params["b_ih"] + params["b_hh"]

    def step(h, x_t):
        h_new = jnp.tanh(x_t @ params["w_ih"] + h @ params["w_hh"] + b)
        return h_new, h_new

    h_final, hs = lax.scan(step, h0[0], jnp.transpose(emb, (1, 0, 2)))
    out = jnp.transpose(hs, (1, 0, 2))                   # (batch, seq, hidden)
    logits = out @ params["w_fc"] + params["b_fc"]
    return logits, h_final[None]


if __name__ == "__main__":
    vocab_size = 4        # len('helo')
    embedding_dim = 8
    hidden_size = 32
    batch_size = 2
    seq_len = 8

    key = jax.random.PRNGKey(0)
    k_params, k_x = jax.random.split(key)
    params = init_params(k_params, vocab_size, embedding_dim, hidden_size)

    x = jax.random.randint(k_x, (batch_size, seq_len), 0, vocab_size, jnp.int32)
    h0 = jnp.zeros((1, batch_size, hidden_size), jnp.float32)  # init_hidden

    logits, h_new = simple_rnn_forward(x, h0, params)
    jax.block_until_ready((logits, h_new))

    ref_logits, ref_h = reference_forward(x, h0, params)
    assert logits.shape == (batch_size, seq_len, vocab_size)
    assert h_new.shape == (1, batch_size, hidden_size)
    assert jnp.allclose(logits, ref_logits, atol=1e-5, rtol=1e-5)
    assert jnp.allclose(h_new, ref_h, atol=1e-5, rtol=1e-5)

    print("KERNEL_OK")
</pallas_src>

<mosaic_0001>
module attributes {stable_mosaic.version = 11 : i64} {
  func.func @rnn_kernel(%arg0: memref<16x1xi32, #tpu.memory_space<vmem>>, %arg1: memref<2x32xf32, #tpu.memory_space<vmem>>, %arg2: memref<4x32xf32, #tpu.memory_space<vmem>>, %arg3: memref<32x32xf32, #tpu.memory_space<vmem>>, %arg4: memref<1x32xf32, #tpu.memory_space<vmem>>, %arg5: memref<1x32xf32, #tpu.memory_space<vmem>>, %arg6: memref<32x4xf32, #tpu.memory_space<vmem>>, %arg7: memref<1x4xf32, #tpu.memory_space<vmem>>, %arg8: memref<16x4xf32, #tpu.memory_space<vmem>>, %arg9: memref<2x32xf32, #tpu.memory_space<vmem>>, %arg10: memref<16x32xf32, #tpu.memory_space<vmem>>) attributes {dimension_semantics = [], scalar_prefetch = 0 : i64, scratch_operands = 1 : i64, tpu.core_type = #tpu.core_type<tc>} {
    %c0 = arith.constant 0 : index
    %c0_0 = arith.constant 0 : index
    %0 = vector.load %arg0[%c0, %c0_0] : memref<16x1xi32, #tpu.memory_space<vmem>>, vector<16x1xi32>
    %1 = tpu.iota {dimensions = array<i32: 1>} : vector<16x4xi32>
    %2 = vector.broadcast %0 : vector<16x1xi32> to vector<16x4xi32>
    %3 = arith.cmpi eq, %2, %1 : vector<16x4xi32>
    %4 = arith.extui %3 : vector<16x4xi1> to vector<16x4xi32>
    %5 = arith.sitofp %4 : vector<16x4xi32> to vector<16x4xf32>
    %c0_1 = arith.constant 0 : index
    %c0_2 = arith.constant 0 : index
    %6 = vector.load %arg4[%c0_1, %c0_2] : memref<1x32xf32, #tpu.memory_space<vmem>>, vector<1x32xf32>
    %c0_3 = arith.constant 0 : index
    %c0_4 = arith.constant 0 : index
    %7 = vector.load %arg5[%c0_3, %c0_4] : memref<1x32xf32, #tpu.memory_space<vmem>>, vector<1x32xf32>
    %8 = arith.addf %6, %7 : vector<1x32xf32>
    %c0_5 = arith.constant 0 : index
    %c0_6 = arith.constant 0 : index
    %9 = vector.load %arg2[%c0_5, %c0_6] : memref<4x32xf32, #tpu.memory_space<vmem>>, vector<4x32xf32>
    %cst = arith.constant dense<0.000000e+00> : vector<16x32xf32>
    %10 = tpu.matmul %5, %9, %cst {dimension_numbers = #tpu.dot_dimension_numbers<[1], [0], [0], [1], [0, 0, 1, 1], [], []>} : vector<16x4xf32>, vector<4x32xf32>, vector<16x32xf32> -> vector<16x32xf32>
    %11 = vector.broadcast %8 : vector<1x32xf32> to vector<16x32xf32>
    %12 = arith.addf %10, %11 : vector<16x32xf32>
    %c0_7 = arith.constant 0 : index
    %c0_8 = arith.constant 0 : index
    %13 = vector.load %arg3[%c0_7, %c0_8] : memref<32x32xf32, #tpu.memory_space<vmem>>, vector<32x32xf32>
    %c0_9 = arith.constant 0 : index
    %c0_10 = arith.constant 0 : index
    %14 = vector.load %arg1[%c0_9, %c0_10] : memref<2x32xf32, #tpu.memory_space<vmem>>, vector<2x32xf32>
    %15 = vector.extract_strided_slice %12 {offsets = [0, 0], sizes = [2, 32], strides = [1, 1]} : vector<16x32xf32> to vector<2x32xf32>
    %cst_11 = arith.constant dense<0.000000e+00> : vector<2x32xf32>
    %16 = tpu.matmul %14, %13, %cst_11 {dimension_numbers = #tpu.dot_dimension_numbers<[1], [0], [0], [1], [0, 0, 1, 1], [], []>} : vector<2x32xf32>, vector<32x32xf32>, vector<2x32xf32> -> vector<2x32xf32>
    %17 = arith.addf %15, %16 : vector<2x32xf32>
    %18 = math.tanh %17 : vector<2x32xf32>
    %c0_12 = arith.constant 0 : index
    %c0_13 = arith.constant 0 : index
    %19 = vector.load %arg10[%c0_12, %c0_13] : memref<16x32xf32, #tpu.memory_space<vmem>>, vector<2x32xf32>
    tpu.vector_store %arg10[%c0_12, %c0_13], %18 {strides = array<i32>} : memref<16x32xf32, #tpu.memory_space<vmem>>, vector<2x32xf32>,
    %20 = vector.extract_strided_slice %12 {offsets = [2, 0], sizes = [2, 32], strides = [1, 1]} : vector<16x32xf32> to vector<2x32xf32>
    %cst_14 = arith.constant dense<0.000000e+00> : vector<2x32xf32>
    %21 = tpu.matmul %18, %13, %cst_14 {dimension_numbers = #tpu.dot_dimension_numbers<[1], [0], [0], [1], [0, 0, 1, 1], [], []>} : vector<2x32xf32>, vector<32x32xf32>, vector<2x32xf32> -> vector<2x32xf32>
    %22 = arith.addf %20, %21 : vector<2x32xf32>
    %23 = math.tanh %22 : vector<2x32xf32>
    %c2 = arith.constant 2 : index
    %c0_15 = arith.constant 0 : index
    %24 = vector.load %arg10[%c2, %c0_15] : memref<16x32xf32, #tpu.memory_space<vmem>>, vector<2x32xf32>
    tpu.vector_store %arg10[%c2, %c0_15], %23 {strides = array<i32>} : memref<16x32xf32, #tpu.memory_space<vmem>>, vector<2x32xf32>,
    %25 = vector.extract_strided_slice %12 {offsets = [4, 0], sizes = [2, 32], strides = [1, 1]} : vector<16x32xf32> to vector<2x32xf32>
    %cst_16 = arith.constant dense<0.000000e+00> : vector<2x32xf32>
    %26 = tpu.matmul %23, %13, %cst_16 {dimension_numbers = #tpu.dot_dimension_numbers<[1], [0], [0], [1], [0, 0, 1, 1], [], []>} : vector<2x32xf32>, vector<32x32xf32>, vector<2x32xf32> -> vector<2x32xf32>
    %27 = arith.addf %25, %26 : vector<2x32xf32>
    %28 = math.tanh %27 : vector<2x32xf32>
    %c4 = arith.constant 4 : index
    %c0_17 = arith.constant 0 : index
    %29 = vector.load %arg10[%c4, %c0_17] : memref<16x32xf32, #tpu.memory_space<vmem>>, vector<2x32xf32>
    tpu.vector_store %arg10[%c4, %c0_17], %28 {strides = array<i32>} : memref<16x32xf32, #tpu.memory_space<vmem>>, vector<2x32xf32>,
    %30 = vector.extract_strided_slice %12 {offsets = [6, 0], sizes = [2, 32], strides = [1, 1]} : vector<16x32xf32> to vector<2x32xf32>
    %cst_18 = arith.constant dense<0.000000e+00> : vector<2x32xf32>
    %31 = tpu.matmul %28, %13, %cst_18 {dimension_numbers = #tpu.dot_dimension_numbers<[1], [0], [0], [1], [0, 0, 1, 1], [], []>} : vector<2x32xf32>, vector<32x32xf32>, vector<2x32xf32> -> vector<2x32xf32>
    %32 = arith.addf %30, %31 : vector<2x32xf32>
    %33 = math.tanh %32 : vector<2x32xf32>
    %c6 = arith.constant 6 : index
    %c0_19 = arith.constant 0 : index
    %34 = vector.load %arg10[%c6, %c0_19] : memref<16x32xf32, #tpu.memory_space<vmem>>, vector<2x32xf32>
    tpu.vector_store %arg10[%c6, %c0_19], %33 {strides = array<i32>} : memref<16x32xf32, #tpu.memory_space<vmem>>, vector<2x32xf32>,
    %35 = vector.extract_strided_slice %12 {offsets = [8, 0], sizes = [2, 32], strides = [1, 1]} : vector<16x32xf32> to vector<2x32xf32>
    %cst_20 = arith.constant dense<0.000000e+00> : vector<2x32xf32>
    %36 = tpu.matmul %33, %13, %cst_20 {dimension_numbers = #tpu.dot_dimension_numbers<[1], [0], [0], [1], [0, 0, 1, 1], [], []>} : vector<2x32xf32>, vector<32x32xf32>, vector<2x32xf32> -> vector<2x32xf32>
    %37 = arith.addf %35, %36 : vector<2x32xf32>
    %38 = math.tanh %37 : vector<2x32xf32>
    %c8 = arith.constant 8 : index
    %c0_21 = arith.constant 0 : index
    %39 = vector.load %arg10[%c8, %c0_21] : memref<16x32xf32, #tpu.memory_space<vmem>>, vector<2x32xf32>
    tpu.vector_store %arg10[%c8, %c0_21], %38 {strides = array<i32>} : memref<16x32xf32, #tpu.memory_space<vmem>>, vector<2x32xf32>,
    %40 = vector.extract_strided_slice %12 {offsets = [10, 0], sizes = [2, 32], strides = [1, 1]} : vector<16x32xf32> to vector<2x32xf32>
    %cst_22 = arith.constant dense<0.000000e+00> : vector<2x32xf32>
    %41 = tpu.matmul %38, %13, %cst_22 {dimension_numbers = #tpu.dot_dimension_numbers<[1], [0], [0], [1], [0, 0, 1, 1], [], []>} : vector<2x32xf32>, vector<32x32xf32>, vector<2x32xf32> -> vector<2x32xf32>
    %42 = arith.addf %40, %41 : vector<2x32xf32>
    %43 = math.tanh %42 : vector<2x32xf32>
    %c10 = arith.constant 10 : index
    %c0_23 = arith.constant 0 : index
    %44 = vector.load %arg10[%c10, %c0_23] : memref<16x32xf32, #tpu.memory_space<vmem>>, vector<2x32xf32>
    tpu.vector_store %arg10[%c10, %c0_23], %43 {strides = array<i32>} : memref<16x32xf32, #tpu.memory_space<vmem>>, vector<2x32xf32>,
    %45 = vector.extract_strided_slice %12 {offsets = [12, 0], sizes = [2, 32], strides = [1, 1]} : vector<16x32xf32> to vector<2x32xf32>
    %cst_24 = arith.constant dense<0.000000e+00> : vector<2x32xf32>
    %46 = tpu.matmul %43, %13, %cst_24 {dimension_numbers = #tpu.dot_dimension_numbers<[1], [0], [0], [1], [0, 0, 1, 1], [], []>} : vector<2x32xf32>, vector<32x32xf32>, vector<2x32xf32> -> vector<2x32xf32>
    %47 = arith.addf %45, %46 : vector<2x32xf32>
    %48 = math.tanh %47 : vector<2x32xf32>
    %c12 = arith.constant 12 : index
    %c0_25 = arith.constant 0 : index
    %49 = vector.load %arg10[%c12, %c0_25] : memref<16x32xf32, #tpu.memory_space<vmem>>, vector<2x32xf32>
    tpu.vector_store %arg10[%c12, %c0_25], %48 {strides = array<i32>} : memref<16x32xf32, #tpu.memory_space<vmem>>, vector<2x32xf32>,
    %50 = vector.extract_strided_slice %12 {offsets = [14, 0], sizes = [2, 32], strides = [1, 1]} : vector<16x32xf32> to vector<2x32xf32>
    %cst_26 = arith.constant dense<0.000000e+00> : vector<2x32xf32>
    %51 = tpu.matmul %48, %13, %cst_26 {dimension_numbers = #tpu.dot_dimension_numbers<[1], [0], [0], [1], [0, 0, 1, 1], [], []>} : vector<2x32xf32>, vector<32x32xf32>, vector<2x32xf32> -> vector<2x32xf32>
    %52 = arith.addf %50, %51 : vector<2x32xf32>
    %53 = math.tanh %52 : vector<2x32xf32>
    %c14 = arith.constant 14 : index
    %c0_27 = arith.constant 0 : index
    %54 = vector.load %arg10[%c14, %c0_27] : memref<16x32xf32, #tpu.memory_space<vmem>>, vector<2x32xf32>
    tpu.vector_store %arg10[%c14, %c0_27], %53 {strides = array<i32>} : memref<16x32xf32, #tpu.memory_space<vmem>>, vector<2x32xf32>,
    %c0_28 = arith.constant 0 : index
    %c0_29 = arith.constant 0 : index
    %55 = vector.load %arg9[%c0_28, %c0_29] : memref<2x32xf32, #tpu.memory_space<vmem>>, vector<2x32xf32>
    tpu.vector_store %arg9[%c0_28, %c0_29], %53 {strides = array<i32>} : memref<2x32xf32, #tpu.memory_space<vmem>>, vector<2x32xf32>,
    %c0_30 = arith.constant 0 : index
    %c0_31 = arith.constant 0 : index
    %56 = vector.load %arg10[%c0_30, %c0_31] : memref<16x32xf32, #tpu.memory_space<vmem>>, vector<16x32xf32>
    %c0_32 = arith.constant 0 : index
    %c0_33 = arith.constant 0 : index
    %57 = vector.load %arg6[%c0_32, %c0_33] : memref<32x4xf32, #tpu.memory_space<vmem>>, vector<32x4xf32>
    %cst_34 = arith.constant dense<0.000000e+00> : vector<16x4xf32>
    %58 = tpu.matmul %56, %57, %cst_34 {dimension_numbers = #tpu.dot_dimension_numbers<[1], [0], [0], [1], [0, 0, 1, 1], [], []>} : vector<16x32xf32>, vector<32x4xf32>, vector<16x4xf32> -> vector<16x4xf32>
    %c0_35 = arith.constant 0 : index
    %c0_36 = arith.constant 0 : index
    %59 = vector.load %arg7[%c0_35, %c0_36] : memref<1x4xf32, #tpu.memory_space<vmem>>, vector<1x4xf32>
    %60 = vector.broadcast %59 : vector<1x4xf32> to vector<16x4xf32>
    %61 = arith.addf %58, %60 : vector<16x4xf32>
    %c0_37 = arith.constant 0 : index
    %c0_38 = arith.constant 0 : index
    %62 = vector.load %arg8[%c0_37, %c0_38] : memref<16x4xf32, #tpu.memory_space<vmem>>, vector<16x4xf32>
    tpu.vector_store %arg8[%c0_37, %c0_38], %61 {strides = array<i32>} : memref<16x4xf32, #tpu.memory_space<vmem>>, vector<16x4xf32>,
    return
  }
}

</mosaic_0001>

<llo_original>
// kernel: simple_rnn_forward.1
$region0: #{simple_rnn_forward.1}
  #allocation0 [shape = 'u32[]', space=smem, size = 0x4, offset = 0x4, fixed_abs, tag = 'smem constant byte address 0x4 - core index']
  #allocation1 [shape = 'u32[144,128]{1,0:T(1,128)}', space=vmem, size = 0x12000, scoped, tag = 'internal scratch']
  #allocation2 [shape = 'f32[16,32]{1,0:T(8,128)}', space=vmem, size = 0x2000, scoped, tag = 'scratch operand']
  %s0 = inlined_call_operand.vmem [shape: s32[16,1], index: 0, kind: input, shape index: {}]
  %s1 = inlined_call_operand.vmem [shape: f32[2,32], index: 1, kind: input, shape index: {}]
  %s2 = inlined_call_operand.vmem [shape: f32[4,32], index: 2, kind: input, shape index: {}]
  %s3 = inlined_call_operand.vmem [shape: f32[32,32], index: 3, kind: input, shape index: {}]
  %s4 = inlined_call_operand.vmem [shape: f32[1,32], index: 4, kind: input, shape index: {}]
  %s5 = inlined_call_operand.vmem [shape: f32[1,32], index: 5, kind: input, shape index: {}]
  %s6 = inlined_call_operand.vmem [shape: f32[32,4], index: 6, kind: input, shape index: {}]
  %s7 = inlined_call_operand.vmem [shape: f32[1,4], index: 7, kind: input, shape index: {}]
  %s8 = inlined_call_operand.vmem [shape: f32[16,4], index: 8, kind: output, shape index: {0}]
  %s9 = inlined_call_operand.hbm [shape: f32[2,32], index: 9, kind: output, shape index: {1}]
  %10 = xla_tuple %s8, %s9
  %s11 = sld [smem:[#allocation0]]
  $region50: #{simple_rnn_forward.1} parent=0
    _
  %s13 = ssub.s32 1, %s11
  %s14 = scalar_select 0, %s13, %s11
  $region1: #{simple_rnn_forward.1} parent=0
    #allocation3 [shape = 'u8[1024]{0}', space=vmem, size = 0x400, scoped, tag = 'output window, operand 1, single buffered']
    #allocation4 [shape = 's32[1]{0}', space=sflag, size = 0x4, scoped, tag = 'scoped memory for simple_rnn_forward.1']
    %15 = vsyncpa [#allocation4], 0
    // Predicated region
    $region2: #{simple_rnn_forward.1} parent=1 // pred_check
      _
    $region3: #{simple_rnn_forward.1} parent=1 // pred_check_branch
      %17 = sbr.rel (0) target = $region5
    $region4: #{simple_rnn_forward.1} parent=1 // pred_region
      _
    $region5: #{simple_rnn_forward.1} parent=1 // pred_fallthru
      _
    // Predicated region
    $region6: #{simple_rnn_forward.1} parent=1 // pred_check
      _
    $region7: #{simple_rnn_forward.1} parent=1 // pred_check_branch
      %19 = sbr.rel (0) target = $region9
    $region8: #{simple_rnn_forward.1} parent=1 // pred_region
      _
    $region9: #{simple_rnn_forward.1} parent=1 // pred_fallthru
      _
    // Predicated region
    $region10: #{simple_rnn_forward.1} parent=1 // pred_check
      _
    $region11: #{simple_rnn_forward.1} parent=1 // pred_check_branch
      %21 = sbr.rel (0) target = $region13
    $region12: #{simple_rnn_forward.1} parent=1 // pred_region
      _
    $region13: #{simple_rnn_forward.1} parent=1 // pred_fallthru
      _
    // Predicated region
    $region14: #{simple_rnn_forward.1} parent=1 // pred_check
      _
    $region15: #{simple_rnn_forward.1} parent=1 // pred_check_branch
      %23 = sbr.rel (0) target = $region17
    $region16: #{simple_rnn_forward.1} parent=1 // pred_region
      _
    $region17: #{simple_rnn_forward.1} parent=1 // pred_fallthru
      _
    // Predicated region
    $region18: #{simple_rnn_forward.1} parent=1 // pred_check
      _
    $region19: #{simple_rnn_forward.1} parent=1 // pred_check_branch
      %25 = sbr.rel (0) target = $region21
    $region20: #{simple_rnn_forward.1} parent=1 // pred_region
      _
    $region21: #{simple_rnn_forward.1} parent=1 // pred_fallthru
      _
    // Predicated region
    $region22: #{simple_rnn_forward.1} parent=1 // pred_check
      _
    $region23: #{simple_rnn_forward.1} parent=1 // pred_check_branch
      %27 = sbr.rel (0) target = $region25
    $region24: #{simple_rnn_forward.1} parent=1 // pred_region
      _
    $region25: #{simple_rnn_forward.1} parent=1 // pred_fallthru
      _
    // Predicated region
    $region26: #{simple_rnn_forward.1} parent=1 // pred_check
      _
    $region27: #{simple_rnn_forward.1} parent=1 // pred_check_branch
      %29 = sbr.rel (0) target = $region29
    $region28: #{simple_rnn_forward.1} parent=1 // pred_region
      _
    $region29: #{simple_rnn_forward.1} parent=1 // pred_fallthru
      _
    // Predicated region
    $region30: #{simple_rnn_forward.1} parent=1 // pred_check
      _
    $region31: #{simple_rnn_forward.1} parent=1 // pred_check_branch
      %31 = sbr.rel (0) target = $region33
    $region32: #{simple_rnn_forward.1} parent=1 // pred_region
      _
    $region33: #{simple_rnn_forward.1} parent=1 // pred_fallthru
      _
    %v32 = vld [vmem:[%s0] sm:$0xff]
    %v33 = vld [vmem:[%s0 + $0x8] sm:$0xff]
    %v34 = vlaneseq
    %v35 = vand.u32 %v34, 127
    %36 = vset.pattern.permute.xlu0 0
    %37 = vperm.xlu0 %36, %v32
    %v38 = vpop.permute.xlu0 %37
    %39 = vset.pattern.permute.xlu0 0
    %40 = vperm.xlu0 %39, %v33
    %v41 = vpop.permute.xlu0 %40
    %vm42 = vcmp.eq.s32.totalorder %v38, %v35
    %vm43 = vcmp.eq.s32.totalorder %v41, %v35
    %v44 = vsel %vm42, 1, 0
    %v45 = vsel %vm43, 1, 0
    %v46 = vcvt.s32.f32 %v44
    %v47 = vcvt.s32.f32 %v45
    %v48 = vld [vmem:[%s4] sm:$0x1]
    %v49 = vld [vmem:[%s5] sm:$0x1]
    %v50 = vadd.f32 %v48, %v49
    %v51 = vld [vmem:[%s2] sm:$0xf]
    %v53 = vlaneseq
    %v54 = vshrl.u32 %v53, 7
    %v55 = vsub.s32 0, %v54
    %v56 = vrot.slane %v50, %v55
    %vm58 = vcmask 31744
    %v60 = vsel %vm58, %v46, 0
    %v63 = vsel %vm58, %v47, 0
    %vm65 = vcmask 1043456
    %v67 = vsel %vm65, %v51, 0
    %69 = vmatprep.subr.mxu0 0.0
    %70 = vmatpush1.msra.mxu0 %v67
    %71 = vmatprep.subr.mxu0 0.0
    %72 = vmatpush1.msra.mxu0 0.0
    %73 = vmatprep.subr.mxu0 0.0
    %74 = vmatpush1.msra.mxu0 0.0
    %75 = vmatprep.subr.mxu0 0.0
    %76 = vmatpush1.msra.mxu0 0.0
    %77 = vmatprep.subr.mxu0 0.0
    %78 = vmatpush1.msra.mxu0 0.0
    %79 = vmatprep.subr.mxu0 0.0
    %80 = vmatpush1.msra.mxu0 0.0
    %81 = vmatprep.subr.mxu0 0.0
    %82 = vmatpush1.msra.mxu0 0.0
    %83 = vmatprep.subr.mxu0 0.0
    %84 = vmatpush1.msra.mxu0 0.0
    %85 = vmatprep.subr.mxu0 0.0
    %86 = vmatpush1.msra.mxu0 0.0
    %87 = vmatprep.subr.mxu0 0.0
    %88 = vmatpush1.msra.mxu0 0.0
    %89 = vmatprep.subr.mxu0 0.0
    %90 = vmatpush1.msra.mxu0 0.0
    %91 = vmatprep.subr.mxu0 0.0
    %92 = vmatpush1.msra.mxu0 0.0
    %93 = vmatprep.subr.mxu0 0.0
    %94 = vmatpush1.msra.mxu0 0.0
    %95 = vmatprep.subr.mxu0 0.0
    %96 = vmatpush1.msra.mxu0 0.0
    %97 = vmatprep.subr.mxu0 0.0
    %98 = vmatpush1.msra.mxu0 0.0
    %99 = vmatprep.subr.mxu0 0.0
    %100 = vmatpush1.msra.mxu0 0.0
    %101 = vmatprep.subr.mxu0 0.0
    %102 = vmatpush1.msra.mxu0 0.0
    %103 = vmatprep.subr.mxu0 0.0
    %104 = vmatpush1.msra.mxu0 0.0
    %105 = vmatprep.subr.mxu0 0.0
    %106 = vmatpush1.msra.mxu0 0.0
    %107 = vmatprep.subr.mxu0 0.0
    %108 = vmatpush1.msra.mxu0 0.0
    %109 = vmatprep.subr.mxu0 0.0
    %110 = vmatpush1.msra.mxu0 0.0
    %111 = vmatprep.subr.mxu0 0.0
    %112 = vmatpush1.msra.mxu0 0.0
    %113 = vmatprep.subr.mxu0 0.0
    %114 = vmatpush1.msra.mxu0 0.0
    %115 = vmatprep.subr.mxu0 0.0
    %116 = vmatpush1.msra.mxu0 0.0
    %117 = vmatprep.subr.mxu0 0.0
    %118 = vmatpush1.msra.mxu0 0.0
    %119 = vmatprep.subr.mxu0 0.0
    %120 = vmatpush1.msra.mxu0 0.0
    %121 = vmatprep.subr.mxu0 0.0
    %122 = vmatpush1.msra.mxu0 0.0
    %123 = vmatprep.subr.mxu0 0.0
    %124 = vmatpush1.msra.mxu0 0.0
    %125 = vmatprep.subr.mxu0 0.0
    %126 = vmatpush1.msra.mxu0 0.0
    %127 = vmatprep.subr.mxu0 0.0
    %128 = vmatpush1.msra.mxu0 0.0
    %129 = vmatprep.subr.mxu0 0.0
    %130 = vmatpush1.msra.mxu0 0.0
    %131 = vmatprep.subr.mxu0 0.0
    %132 = vmatpush1.msra.mxu0 0.0
    %133 = vmatprep.mubr.f32.mxu0 0.0
    %134 = vmatmul.mubr.f32.gmra.mrb[0].mxu0 %v60
    %v135 = vpop.f32.mrb[0].mxu0
    %v136 = vadd.f32 %v56, %v135
    %v137 = vpop.f32.mrb[0].mxu0
    %138 = vmatprep.mubr.f32.mxu0 0.0
    %139 = vmatmul.mubr.f32.gmra.mrb[0].mxu0 %v63
    %v140 = vpop.f32.mrb[0].mxu0
    %v141 = vadd.f32 %v56, %v140
    %v142 = vpop.f32.mrb[0].mxu0
    %143 = vdwg.mxu0
    %v144 = vld [vmem:[%s3] sm:$0xff]
    %v145 = vld [vmem:[%s3 + $0x8] sm:$0xff]
    %v146 = vld [vmem:[%s3 + $0x10] sm:$0xff]
    %v147 = vld [vmem:[%s3 + $0x18] sm:$0xff]
    %v148 = vld [vmem:[%s1] sm:$0x3]
    %vm149 = vcmask 261120
    %v151 = vsel %vm149, %v148, 0
    %153 = vmatprep.subr.mxu0 0.0
    %154 = vmatpush1.msra.mxu0 %v144
    %155 = vmatprep.subr.mxu0 0.0
    %156 = vmatpush1.msra.mxu0 %v145
    %157 = vmatprep.subr.mxu0 0.0
    %158 = vmatpush1.msra.mxu0 %v146
    %159 = vmatprep.subr.mxu0 0.0
    %160 = vmatpush1.msra.mxu0 %v147
    %161 = vmatprep.subr.mxu0 0.0
    %162 = vmatpush1.msra.mxu0 0.0
    %163 = vmatprep.subr.mxu0 0.0
    %164 = vmatpush1.msra.mxu0 0.0
    %165 = vmatprep.subr.mxu0 0.0
    %166 = vmatpush1.msra.mxu0 0.0
    %167 = vmatprep.subr.mxu0 0.0
    %168 = vmatpush1.msra.mxu0 0.0
    %169 = vmatprep.subr.mxu0 0.0
    %170 = vmatpush1.msra.mxu0 0.0
    %171 = vmatprep.subr.mxu0 0.0
    %172 = vmatpush1.msra.mxu0 0.0
    %173 = vmatprep.subr.mxu0 0.0
    %174 = vmatpush1.msra.mxu0 0.0
    %175 = vmatprep.subr.mxu0 0.0
    %176 = vmatpush1.msra.mxu0 0.0
    %177 = vmatprep.subr.mxu0 0.0
    %178 = vmatpush1.msra.mxu0 0.0
    %179 = vmatprep.subr.mxu0 0.0
    %180 = vmatpush1.msra.mxu0 0.0
    %181 = vmatprep.subr.mxu0 0.0
    %182 = vmatpush1.msra.mxu0 0.0
    %183 = vmatprep.subr.mxu0 0.0
    %184 = vmatpush1.msra.mxu0 0.0
    %185 = vmatprep.subr.mxu0 0.0
    %186 = vmatpush1.msra.mxu0 0.0
    %187 = vmatprep.subr.mxu0 0.0
    %188 = vmatpush1.msra.mxu0 0.0
    %189 = vmatprep.subr.mxu0 0.0
    %190 = vmatpush1.msra.mxu0 0.0
    %191 = vmatprep.subr.mxu0 0.0
    %192 = vmatpush1.msra.mxu0 0.0
    %193 = vmatprep.subr.mxu0 0.0
    %194 = vmatpush1.msra.mxu0 0.0
    %195 = vmatprep.subr.mxu0 0.0
    %196 = vmatpush1.msra.mxu0 0.0
    %197 = vmatprep.subr.mxu0 0.0
    %198 = vmatpush1.msra.mxu0 0.0
    %199 = vmatprep.subr.mxu0 0.0
    %200 = vmatpush1.msra.mxu0 0.0
    %201 = vmatprep.subr.mxu0 0.0
    %202 = vmatpush1.msra.mxu0 0.0
    %203 = vmatprep.subr.mxu0 0.0
    %204 = vmatpush1.msra.mxu0 0.0
    %205 = vmatprep.subr.mxu0 0.0
    %206 = vmatpush1.msra.mxu0 0.0
    %207 = vmatprep.subr.mxu0 0.0
    %208 = vmatpush1.msra.mxu0 0.0
    %209 = vmatprep.subr.mxu0 0.0
    %210 = vmatpush1.msra.mxu0 0.0
    %211 = vmatprep.subr.mxu0 0.0
    %212 = vmatpush1.msra.mxu0 0.0
    %213 = vmatprep.subr.mxu0 0.0
    %214 = vmatpush1.msra.mxu0 0.0
    %215 = vmatprep.subr.mxu0 0.0
    %216 = vmatpush1.msra.mxu0 0.0
    %217 = vmatprep.mubr.f32.mxu0 0.0
    %218 = vmatmul.mubr.f32.gmra.mrb[0].mxu0 %v151
    %v219 = vpop.f32.mrb[0].mxu0
    %v220 = vadd.f32 0.0, %v219
    %v221 = vpop.f32.mrb[0].mxu0
    %222 = vdwg.mxu0
    %v223 = vadd.f32 %v136, %v220
    %v224 = vtanh.pop %v223
    %vm225 = vcmask 254976
    %226 = vst.msk [vmem:[#allocation2] sm:$0x3] %vm225, %v224
    %v228 = vsel %vm149, %v224, 0
    %230 = vmatprep.subr.mxu0 0.0
    %231 = vmatpush1.msra.mxu0 %v144
    %232 = vmatprep.subr.mxu0 0.0
    %233 = vmatpush1.msra.mxu0 %v145
    %234 = vmatprep.subr.mxu0 0.0
    %235 = vmatpush1.msra.mxu0 %v146
    %236 = vmatprep.subr.mxu0 0.0
    %237 = vmatpush1.msra.mxu0 %v147
    %238 = vmatprep.subr.mxu0 0.0
    %239 = vmatpush1.msra.mxu0 0.0
    %240 = vmatprep.subr.mxu0 0.0
    %241 = vmatpush1.msra.mxu0 0.0
    %242 = vmatprep.subr.mxu0 0.0
    %243 = vmatpush1.msra.mxu0 0.0
    %244 = vmatprep.subr.mxu0 0.0
    %245 = vmatpush1.msra.mxu0 0.0
    %246 = vmatprep.subr.mxu0 0.0
    %247 = vmatpush1.msra.mxu0 0.0
    %248 = vmatprep.subr.mxu0 0.0
    %249 = vmatpush1.msra.mxu0 0.0
    %250 = vmatprep.subr.mxu0 0.0
    %251 = vmatpush1.msra.mxu0 0.0
    %252 = vmatprep.subr.mxu0 0.0
    %253 = vmatpush1.msra.mxu0 0.0
    %254 = vmatprep.subr.mxu0 0.0
    %255 = vmatpush1.msra.mxu0 0.0
    %256 = vmatprep.subr.mxu0 0.0
    %257 = vmatpush1.msra.mxu0 0.0
    %258 = vmatprep.subr.mxu0 0.0
    %259 = vmatpush1.msra.mxu0 0.0
    %260 = vmatprep.subr.mxu0 0.0
    %261 = vmatpush1.msra.mxu0 0.0
    %262 = vmatprep.subr.mxu0 0.0
    %263 = vmatpush1.msra.mxu0 0.0
    %264 = vmatprep.subr.mxu0 0.0
    %265 = vmatpush1.msra.mxu0 0.0
    %266 = vmatprep.subr.mxu0 0.0
    %267 = vmatpush1.msra.mxu0 0.0
    %268 = vmatprep.subr.mxu0 0.0
    %269 = vmatpush1.msra.mxu0 0.0
    %270 = vmatprep.subr.mxu0 0.0
    %271 = vmatpush1.msra.mxu0 0.0
    %272 = vmatprep.subr.mxu0 0.0
    %273 = vmatpush1.msra.mxu0 0.0
    %274 = vmatprep.subr.mxu0 0.0
    %275 = vmatpush1.msra.mxu0 0.0
    %276 = vmatprep.subr.mxu0 0.0
    %277 = vmatpush1.msra.mxu0 0.0
    %278 = vmatprep.subr.mxu0 0.0
    %279 = vmatpush1.msra.mxu0 0.0
    %280 = vmatprep.subr.mxu0 0.0
    %281 = vmatpush1.msra.mxu0 0.0
    %282 = vmatprep.subr.mxu0 0.0
    %283 = vmatpush1.msra.mxu0 0.0
    %284 = vmatprep.subr.mxu0 0.0
    %285 = vmatpush1.msra.mxu0 0.0
    %286 = vmatprep.subr.mxu0 0.0
    %287 = vmatpush1.msra.mxu0 0.0
    %288 = vmatprep.subr.mxu0 0.0
    %289 = vmatpush1.msra.mxu0 0.0
    %290 = vmatprep.subr.mxu0 0.0
    %291 = vmatpush1.msra.mxu0 0.0
    %292 = vmatprep.subr.mxu0 0.0
    %293 = vmatpush1.msra.mxu0 0.0
    %294 = vmatprep.mubr.f32.mxu0 0.0
    %295 = vmatmul.mubr.f32.gmra.mrb[0].mxu0 %v228
    %v296 = vpop.f32.mrb[0].mxu0
    %v297 = vadd.f32 0.0, %v296
    %v298 = vpop.f32.mrb[0].mxu0
    %299 = vdwg.mxu0
    %v301 = vrot.slane %v297, 6
    %v303 = vadd.f32 %v136, %v301
    %v304 = vtanh.pop %v303
    %vm305 = vcmask 257026
    %306 = vst.msk [vmem:[#allocation2] sm:$0xc] %vm305, %v304
    %v308 = vrot.slane %v304, 2
    %v309 = vsel %vm149, %v308, 0
    %311 = vmatprep.subr.mxu0 0.0
    %312 = vmatpush1.msra.mxu0 %v144
    %313 = vmatprep.subr.mxu0 0.0
    %314 = vmatpush1.msra.mxu0 %v145
    %315 = vmatprep.subr.mxu0 0.0
    %316 = vmatpush1.msra.mxu0 %v146
    %317 = vmatprep.subr.mxu0 0.0
    %318 = vmatpush1.msra.mxu0 %v147
    %319 = vmatprep.subr.mxu0 0.0
    %320 = vmatpush1.msra.mxu0 0.0
    %321 = vmatprep.subr.mxu0 0.0
    %322 = vmatpush1.msra.mxu0 0.0
    %323 = vmatprep.subr.mxu0 0.0
    %324 = vmatpush1.msra.mxu0 0.0
    %325 = vmatprep.subr.mxu0 0.0
    %326 = vmatpush1.msra.mxu0 0.0
    %327 = vmatprep.subr.mxu0 0.0
    %328 = vmatpush1.msra.mxu0 0.0
    %329 = vmatprep.subr.mxu0 0.0
    %330 = vmatpush1.msra.mxu0 0.0
    %331 = vmatprep.subr.mxu0 0.0
    %332 = vmatpush1.msra.mxu0 0.0
    %333 = vmatprep.subr.mxu0 0.0
    %334 = vmatpush1.msra.mxu0 0.0
    %335 = vmatprep.subr.mxu0 0.0
    %336 = vmatpush1.msra.mxu0 0.0
    %337 = vmatprep.subr.mxu0 0.0
    %338 = vmatpush1.msra.mxu0 0.0
    %339 = vmatprep.subr.mxu0 0.0
    %340 = vmatpush1.msra.mxu0 0.0
    %341 = vmatprep.subr.mxu0 0.0
    %342 = vmatpush1.msra.mxu0 0.0
    %343 = vmatprep.subr.mxu0 0.0
    %344 = vmatpush1.msra.mxu0 0.0
    %345 = vmatprep.subr.mxu0 0.0
    %346 = vmatpush1.msra.mxu0 0.0
    %347 = vmatprep.subr.mxu0 0.0
    %348 = vmatpush1.msra.mxu0 0.0
    %349 = vmatprep.subr.mxu0 0.0
    %350 = vmatpush1.msra.mxu0 0.0
    %351 = vmatprep.subr.mxu0 0.0
    %352 = vmatpush1.msra.mxu0 0.0
    %353 = vmatprep.subr.mxu0 0.0
    %354 = vmatpush1.msra.mxu0 0.0
    %355 = vmatprep.subr.mxu0 0.0
    %356 = vmatpush1.msra.mxu0 0.0
    %357 = vmatprep.subr.mxu0 0.0
    %358 = vmatpush1.msra.mxu0 0.0
    %359 = vmatprep.subr.mxu0 0.0
    %360 = vmatpush1.msra.mxu0 0.0
    %361 = vmatprep.subr.mxu0 0.0
    %362 = vmatpush1.msra.mxu0 0.0
    %363 = vmatprep.subr.mxu0 0.0
    %364 = vmatpush1.msra.mxu0 0.0
    %365 = vmatprep.subr.mxu0 0.0
    %366 = vmatpush1.msra.mxu0 0.0
    %367 = vmatprep.subr.mxu0 0.0
    %368 = vmatpush1.msra.mxu0 0.0
    %369 = vmatprep.subr.mxu0 0.0
    %370 = vmatpush1.msra.mxu0 0.0
    %371 = vmatprep.subr.mxu0 0.0
    %372 = vmatpush1.msra.mxu0 0.0
    %373 = vmatprep.subr.mxu0 0.0
    %374 = vmatpush1.msra.mxu0 0.0
    %375 = vmatprep.mubr.f32.mxu0 0.0
    %376 = vmatmul.mubr.f32.gmra.mrb[0].mxu0 %v309
    %v377 = vpop.f32.mrb[0].mxu0
    %v378 = vadd.f32 0.0, %v377
    %v379 = vpop.f32.mrb[0].mxu0
    %380 = vdwg.mxu0
    %v382 = vrot.slane %v378, 4
    %v384 = vadd.f32 %v136, %v382
    %v385 = vtanh.pop %v384
    %vm386 = vcmask 259076
    %387 = vst.msk [vmem:[#allocation2] sm:$0x30] %vm386, %v385
    %v389 = vrot.slane %v385, 4
    %v390 = vsel %vm149, %v389, 0
    %392 = vmatprep.subr.mxu0 0.0
    %393 = vmatpush1.msra.mxu0 %v144
    %394 = vmatprep.subr.mxu0 0.0
    %395 = vmatpush1.msra.mxu0 %v145
    %396 = vmatprep.subr.mxu0 0.0
    %397 = vmatpush1.msra.mxu0 %v146
    %398 = vmatprep.subr.mxu0 0.0
    %399 = vmatpush1.msra.mxu0 %v147
    %400 = vmatprep.subr.mxu0 0.0
    %401 = vmatpush1.msra.mxu0 0.0
    %402 = vmatprep.subr.mxu0 0.0
    %403 = vmatpush1.msra.mxu0 0.0
    %404 = vmatprep.subr.mxu0 0.0
    %405 = vmatpush1.msra.mxu0 0.0
    %406 = vmatprep.subr.mxu0 0.0
    %407 = vmatpush1.msra.mxu0 0.0
    %408 = vmatprep.subr.mxu0 0.0
    %409 = vmatpush1.msra.mxu0 0.0
    %410 = vmatprep.subr.mxu0 0.0
    %411 = vmatpush1.msra.mxu0 0.0
    %412 = vmatprep.subr.mxu0 0.0
    %413 = vmatpush1.msra.mxu0 0.0
    %414 = vmatprep.subr.mxu0 0.0
    %415 = vmatpush1.msra.mxu0 0.0
    %416 = vmatprep.subr.mxu0 0.0
    %417 = vmatpush1.msra.mxu0 0.0
    %418 = vmatprep.subr.mxu0 0.0
    %419 = vmatpush1.msra.mxu0 0.0
    %420 = vmatprep.subr.mxu0 0.0
    %421 = vmatpush1.msra.mxu0 0.0
    %422 = vmatprep.subr.mxu0 0.0
    %423 = vmatpush1.msra.mxu0 0.0
    %424 = vmatprep.subr.mxu0 0.0
    %425 = vmatpush1.msra.mxu0 0.0
    %426 = vmatprep.subr.mxu0 0.0
    %427 = vmatpush1.msra.mxu0 0.0
    %428 = vmatprep.subr.mxu0 0.0
    %429 = vmatpush1.msra.mxu0 0.0
    %430 = vmatprep.subr.mxu0 0.0
    %431 = vmatpush1.msra.mxu0 0.0
    %432 = vmatprep.subr.mxu0 0.0
    %433 = vmatpush1.msra.mxu0 0.0
    %434 = vmatprep.subr.mxu0 0.0
    %435 = vmatpush1.msra.mxu0 0.0
    %436 = vmatprep.subr.mxu0 0.0
    %437 = vmatpush1.msra.mxu0 0.0
    %438 = vmatprep.subr.mxu0 0.0
    %439 = vmatpush1.msra.mxu0 0.0
    %440 = vmatprep.subr.mxu0 0.0
    %441 = vmatpush1.msra.mxu0 0.0
    %442 = vmatprep.subr.mxu0 0.0
    %443 = vmatpush1.msra.mxu0 0.0
    %444 = vmatprep.subr.mxu0 0.0
    %445 = vmatpush1.msra.mxu0 0.0
    %446 = vmatprep.subr.mxu0 0.0
    %447 = vmatpush1.msra.mxu0 0.0
    %448 = vmatprep.subr.mxu0 0.0
    %449 = vmatpush1.msra.mxu0 0.0
    %450 = vmatprep.subr.mxu0 0.0
    %451 = vmatpush1.msra.mxu0 0.0
    %452 = vmatprep.subr.mxu0 0.0
    %453 = vmatpush1.msra.mxu0 0.0
    %454 = vmatprep.subr.mxu0 0.0
    %455 = vmatpush1.msra.mxu0 0.0
    %456 = vmatprep.mubr.f32.mxu0 0.0
    %457 = vmatmul.mubr.f32.gmra.mrb[0].mxu0 %v390
    %v458 = vpop.f32.mrb[0].mxu0
    %v459 = vadd.f32 0.0, %v458
    %v460 = vpop.f32.mrb[0].mxu0
    %461 = vdwg.mxu0
    %v463 = vrot.slane %v459, 2
    %v465 = vadd.f32 %v136, %v463
    %v466 = vtanh.pop %v465
    %vm467 = vcmask 261126
    %468 = vst.msk [vmem:[#allocation2] sm:$0xc0] %vm467, %v466
    %v470 = vrot.slane %v466, 6
    %v471 = vsel %vm149, %v470, 0
    %473 = vmatprep.subr.mxu0 0.0
    %474 = vmatpush1.msra.mxu0 %v144
    %475 = vmatprep.subr.mxu0 0.0
    %476 = vmatpush1.msra.mxu0 %v145
    %477 = vmatprep.subr.mxu0 0.0
    %478 = vmatpush1.msra.mxu0 %v146
    %479 = vmatprep.subr.mxu0 0.0
    %480 = vmatpush1.msra.mxu0 %v147
    %481 = vmatprep.subr.mxu0 0.0
    %482 = vmatpush1.msra.mxu0 0.0
    %483 = vmatprep.subr.mxu0 0.0
    %484 = vmatpush1.msra.mxu0 0.0
    %485 = vmatprep.subr.mxu0 0.0
    %486 = vmatpush1.msra.mxu0 0.0
    %487 = vmatprep.subr.mxu0 0.0
    %488 = vmatpush1.msra.mxu0 0.0
    %489 = vmatprep.subr.mxu0 0.0
    %490 = vmatpush1.msra.mxu0 0.0
    %491 = vmatprep.subr.mxu0 0.0
    %492 = vmatpush1.msra.mxu0 0.0
    %493 = vmatprep.subr.mxu0 0.0
    %494 = vmatpush1.msra.mxu0 0.0
    %495 = vmatprep.subr.mxu0 0.0
    %496 = vmatpush1.msra.mxu0 0.0
    %497 = vmatprep.subr.mxu0 0.0
    %498 = vmatpush1.msra.mxu0 0.0
    %499 = vmatprep.subr.mxu0 0.0
    %500 = vmatpush1.msra.mxu0 0.0
    %501 = vmatprep.subr.mxu0 0.0
    %502 = vmatpush1.msra.mxu0 0.0
    %503 = vmatprep.subr.mxu0 0.0
    %504 = vmatpush1.msra.mxu0 0.0
    %505 = vmatprep.subr.mxu0 0.0
    %506 = vmatpush1.msra.mxu0 0.0
    %507 = vmatprep.subr.mxu0 0.0
    %508 = vmatpush1.msra.mxu0 0.0
    %509 = vmatprep.subr.mxu0 0.0
    %510 = vmatpush1.msra.mxu0 0.0
    %511 = vmatprep.subr.mxu0 0.0
    %512 = vmatpush1.msra.mxu0 0.0
    %513 = vmatprep.subr.mxu0 0.0
    %514 = vmatpush1.msra.mxu0 0.0
    %515 = vmatprep.subr.mxu0 0.0
    %516 = vmatpush1.msra.mxu0 0.0
    %517 = vmatprep.subr.mxu0 0.0
    %518 = vmatpush1.msra.mxu0 0.0
    %519 = vmatprep.subr.mxu0 0.0
    %520 = vmatpush1.msra.mxu0 0.0
    %521 = vmatprep.subr.mxu0 0.0
    %522 = vmatpush1.msra.mxu0 0.0
    %523 = vmatprep.subr.mxu0 0.0
    %524 = vmatpush1.msra.mxu0 0.0
    %525 = vmatprep.subr.mxu0 0.0
    %526 = vmatpush1.msra.mxu0 0.0
    %527 = vmatprep.subr.mxu0 0.0
    %528 = vmatpush1.msra.mxu0 0.0
    %529 = vmatprep.subr.mxu0 0.0
    %530 = vmatpush1.msra.mxu0 0.0
    %531 = vmatprep.subr.mxu0 0.0
    %532 = vmatpush1.msra.mxu0 0.0
    %533 = vmatprep.subr.mxu0 0.0
    %534 = vmatpush1.msra.mxu0 0.0
    %535 = vmatprep.subr.mxu0 0.0
    %536 = vmatpush1.msra.mxu0 0.0
    %537 = vmatprep.mubr.f32.mxu0 0.0
    %538 = vmatmul.mubr.f32.gmra.mrb[0].mxu0 %v471
    %v539 = vpop.f32.mrb[0].mxu0
    %v540 = vadd.f32 0.0, %v539
    %v541 = vpop.f32.mrb[0].mxu0
    %542 = vdwg.mxu0
    %v543 = vadd.f32 %v141, %v540
    %v544 = vtanh.pop %v543
    %545 = vst.msk [vmem:[#allocation2 + $0x8] sm:$0x3] %vm225, %v544
    %v547 = vsel %vm149, %v544, 0
    %549 = vmatprep.subr.mxu0 0.0
    %550 = vmatpush1.msra.mxu0 %v144
    %551 = vmatprep.subr.mxu0 0.0
    %552 = vmatpush1.msra.mxu0 %v145
    %553 = vmatprep.subr.mxu0 0.0
    %554 = vmatpush1.msra.mxu0 %v146
    %555 = vmatprep.subr.mxu0 0.0
    %556 = vmatpush1.msra.mxu0 %v147
    %557 = vmatprep.subr.mxu0 0.0
    %558 = vmatpush1.msra.mxu0 0.0
    %559 = vmatprep.subr.mxu0 0.0
    %560 = vmatpush1.msra.mxu0 0.0
    %561 = vmatprep.subr.mxu0 0.0
    %562 = vmatpush1.msra.mxu0 0.0
    %563 = vmatprep.subr.mxu0 0.0
    %564 = vmatpush1.msra.mxu0 0.0
    %565 = vmatprep.subr.mxu0 0.0
    %566 = vmatpush1.msra.mxu0 0.0
    %567 = vmatprep.subr.mxu0 0.0
    %568 = vmatpush1.msra.mxu0 0.0
    %569 = vmatprep.subr.mxu0 0.0
    %570 = vmatpush1.msra.mxu0 0.0
    %571 = vmatprep.subr.mxu0 0.0
    %572 = vmatpush1.msra.mxu0 0.0
    %573 = vmatprep.subr.mxu0 0.0
    %574 = vmatpush1.msra.mxu0 0.0
    %575 = vmatprep.subr.mxu0 0.0
    %576 = vmatpush1.msra.mxu0 0.0
    %577 = vmatprep.subr.mxu0 0.0
    %578 = vmatpush1.msra.mxu0 0.0
    %579 = vmatprep.subr.mxu0 0.0
    %580 = vmatpush1.msra.mxu0 0.0
    %581 = vmatprep.subr.mxu0 0.0
    %582 = vmatpush1.msra.mxu0 0.0
    %583 = vmatprep.subr.mxu0 0.0
    %584 = vmatpush1.msra.mxu0 0.0
    %585 = vmatprep.subr.mxu0 0.0
    %586 = vmatpush1.msra.mxu0 0.0
    %587 = vmatprep.subr.mxu0 0.0
    %588 = vmatpush1.msra.mxu0 0.0
    %589 = vmatprep.subr.mxu0 0.0
    %590 = vmatpush1.msra.mxu0 0.0
    %591 = vmatprep.subr.mxu0 0.0
    %592 = vmatpush1.msra.mxu0 0.0
    %593 = vmatprep.subr.mxu0 0.0
    %594 = vmatpush1.msra.mxu0 0.0
    %595 = vmatprep.subr.mxu0 0.0
    %596 = vmatpush1.msra.mxu0 0.0
    %597 = vmatprep.subr.mxu0 0.0
    %598 = vmatpush1.msra.mxu0 0.0
    %599 = vmatprep.subr.mxu0 0.0
    %600 = vmatpush1.msra.mxu0 0.0
    %601 = vmatprep.subr.mxu0 0.0
    %602 = vmatpush1.msra.mxu0 0.0
    %603 = vmatprep.subr.mxu0 0.0
    %604 = vmatpush1.msra.mxu0 0.0
    %605 = vmatprep.subr.mxu0 0.0
    %606 = vmatpush1.msra.mxu0 0.0
    %607 = vmatprep.subr.mxu0 0.0
    %608 = vmatpush1.msra.mxu0 0.0
    %609 = vmatprep.subr.mxu0 0.0
    %610 = vmatpush1.msra.mxu0 0.0
    %611 = vmatprep.subr.mxu0 0.0
    %612 = vmatpush1.msra.mxu0 0.0
    %613 = vmatprep.mubr.f32.mxu0 0.0
    %614 = vmatmul.mubr.f32.gmra.mrb[0].mxu0 %v547
    %v615 = vpop.f32.mrb[0].mxu0
    %v616 = vadd.f32 0.0, %v615
    %v617 = vpop.f32.mrb[0].mxu0
    %618 = vdwg.mxu0
    %v620 = vrot.slane %v616, 6
    %v622 = vadd.f32 %v141, %v620
    %v623 = vtanh.pop %v622
    %624 = vst.msk [vmem:[#allocation2 + $0x8] sm:$0xc] %vm305, %v623
    %v626 = vrot.slane %v623, 2
    %v627 = vsel %vm149, %v626, 0
    %629 = vmatprep.subr.mxu0 0.0
    %630 = vmatpush1.msra.mxu0 %v144
    %631 = vmatprep.subr.mxu0 0.0
    %632 = vmatpush1.msra.mxu0 %v145
    %633 = vmatprep.subr.mxu0 0.0
    %634 = vmatpush1.msra.mxu0 %v146
    %635 = vmatprep.subr.mxu0 0.0
    %636 = vmatpush1.msra.mxu0 %v147
    %637 = vmatprep.subr.mxu0 0.0
    %638 = vmatpush1.msra.mxu0 0.0
    %639 = vmatprep.subr.mxu0 0.0
    %640 = vmatpush1.msra.mxu0 0.0
    %641 = vmatprep.subr.mxu0 0.0
    %642 = vmatpush1.msra.mxu0 0.0
    %643 = vmatprep.subr.mxu0 0.0
    %644 = vmatpush1.msra.mxu0 0.0
    %645 = vmatprep.subr.mxu0 0.0
    %646 = vmatpush1.msra.mxu0 0.0
    %647 = vmatprep.subr.mxu0 0.0
    %648 = vmatpush1.msra.mxu0 0.0
    %649 = vmatprep.subr.mxu0 0.0
    %650 = vmatpush1.msra.mxu0 0.0
    %651 = vmatprep.subr.mxu0 0.0
    %652 = vmatpush1.msra.mxu0 0.0
    %653 = vmatprep.subr.mxu0 0.0
    %654 = vmatpush1.msra.mxu0 0.0
    %655 = vmatprep.subr.mxu0 0.0
    %656 = vmatpush1.msra.mxu0 0.0
    %657 = vmatprep.subr.mxu0 0.0
    %658 = vmatpush1.msra.mxu0 0.0
    %659 = vmatprep.subr.mxu0 0.0
    %660 = vmatpush1.msra.mxu0 0.0
    %661 = vmatprep.subr.mxu0 0.0
    %662 = vmatpush1.msra.mxu0 0.0
    %663 = vmatprep.subr.mxu0 0.0
    %664 = vmatpush1.msra.mxu0 0.0
    %665 = vmatprep.subr.mxu0 0.0
    %666 = vmatpush1.msra.mxu0 0.0
    %667 = vmatprep.subr.mxu0 0.0
    %668 = vmatpush1.msra.mxu0 0.0
    %669 = vmatprep.subr.mxu0 0.0
    %670 = vmatpush1.msra.mxu0 0.0
    %671 = vmatprep.subr.mxu0 0.0
    %672 = vmatpush1.msra.mxu0 0.0
    %673 = vmatprep.subr.mxu0 0.0
    %674 = vmatpush1.msra.mxu0 0.0
    %675 = vmatprep.subr.mxu0 0.0
    %676 = vmatpush1.msra.mxu0 0.0
    %677 = vmatprep.subr.mxu0 0.0
    %678 = vmatpush1.msra.mxu0 0.0
    %679 = vmatprep.subr.mxu0 0.0
    %680 = vmatpush1.msra.mxu0 0.0
    %681 = vmatprep.subr.mxu0 0.0
    %682 = vmatpush1.msra.mxu0 0.0
    %683 = vmatprep.subr.mxu0 0.0
    %684 = vmatpush1.msra.mxu0 0.0
    %685 = vmatprep.subr.mxu0 0.0
    %686 = vmatpush1.msra.mxu0 0.0
    %687 = vmatprep.subr.mxu0 0.0
    %688 = vmatpush1.msra.mxu0 0.0
    %689 = vmatprep.subr.mxu0 0.0
    %690 = vmatpush1.msra.mxu0 0.0
    %691 = vmatprep.subr.mxu0 0.0
    %692 = vmatpush1.msra.mxu0 0.0
    %693 = vmatprep.mubr.f32.mxu0 0.0
    %694 = vmatmul.mubr.f32.gmra.mrb[0].mxu0 %v627
    %v695 = vpop.f32.mrb[0].mxu0
    %v696 = vadd.f32 0.0, %v695
    %v697 = vpop.f32.mrb[0].mxu0
    %698 = vdwg.mxu0
    %v700 = vrot.slane %v696, 4
    %v702 = vadd.f32 %v141, %v700
    %v703 = vtanh.pop %v702
    %704 = vst.msk [vmem:[#allocation2 + $0x8] sm:$0x30] %vm386, %v703
    %v706 = vrot.slane %v703, 4
    %v707 = vsel %vm149, %v706, 0
    %709 = vmatprep.subr.mxu0 0.0
    %710 = vmatpush1.msra.mxu0 %v144
    %711 = vmatprep.subr.mxu0 0.0
    %712 = vmatpush1.msra.mxu0 %v145
    %713 = vmatprep.subr.mxu0 0.0
    %714 = vmatpush1.msra.mxu0 %v146
    %715 = vmatprep.subr.mxu0 0.0
    %716 = vmatpush1.msra.mxu0 %v147
    %717 = vmatprep.subr.mxu0 0.0
    %718 = vmatpush1.msra.mxu0 0.0
    %719 = vmatprep.subr.mxu0 0.0
    %720 = vmatpush1.msra.mxu0 0.0
    %721 = vmatprep.subr.mxu0 0.0
    %722 = vmatpush1.msra.mxu0 0.0
    %723 = vmatprep.subr.mxu0 0.0
    %724 = vmatpush1.msra.mxu0 0.0
    %725 = vmatprep.subr.mxu0 0.0
    %726 = vmatpush1.msra.mxu0 0.0
    %727 = vmatprep.subr.mxu0 0.0
    %728 = vmatpush1.msra.mxu0 0.0
    %729 = vmatprep.subr.mxu0 0.0
    %730 = vmatpush1.msra.mxu0 0.0
    %731 = vmatprep.subr.mxu0 0.0
    %732 = vmatpush1.msra.mxu0 0.0
    %733 = vmatprep.subr.mxu0 0.0
    %734 = vmatpush1.msra.mxu0 0.0
    %735 = vmatprep.subr.mxu0 0.0
    %736 = vmatpush1.msra.mxu0 0.0
    %737 = vmatprep.subr.mxu0 0.0
    %738 = vmatpush1.msra.mxu0 0.0
    %739 = vmatprep.subr.mxu0 0.0
    %740 = vmatpush1.msra.mxu0 0.0
    %741 = vmatprep.subr.mxu0 0.0
    %742 = vmatpush1.msra.mxu0 0.0
    %743 = vmatprep.subr.mxu0 0.0
    %744 = vmatpush1.msra.mxu0 0.0
    %745 = vmatprep.subr.mxu0 0.0
    %746 = vmatpush1.msra.mxu0 0.0
    %747 = vmatprep.subr.mxu0 0.0
    %748 = vmatpush1.msra.mxu0 0.0
    %749 = vmatprep.subr.mxu0 0.0
    %750 = vmatpush1.msra.mxu0 0.0
    %751 = vmatprep.subr.mxu0 0.0
    %752 = vmatpush1.msra.mxu0 0.0
    %753 = vmatprep.subr.mxu0 0.0
    %754 = vmatpush1.msra.mxu0 0.0
    %755 = vmatprep.subr.mxu0 0.0
    %756 = vmatpush1.msra.mxu0 0.0
    %757 = vmatprep.subr.mxu0 0.0
    %758 = vmatpush1.msra.mxu0 0.0
    %759 = vmatprep.subr.mxu0 0.0
    %760 = vmatpush1.msra.mxu0 0.0
    %761 = vmatprep.subr.mxu0 0.0
    %762 = vmatpush1.msra.mxu0 0.0
    %763 = vmatprep.subr.mxu0 0.0
    %764 = vmatpush1.msra.mxu0 0.0
    %765 = vmatprep.subr.mxu0 0.0
    %766 = vmatpush1.msra.mxu0 0.0
    %767 = vmatprep.subr.mxu0 0.0
    %768 = vmatpush1.msra.mxu0 0.0
    %769 = vmatprep.subr.mxu0 0.0
    %770 = vmatpush1.msra.mxu0 0.0
    %771 = vmatprep.subr.mxu0 0.0
    %772 = vmatpush1.msra.mxu0 0.0
    %773 = vmatprep.mubr.f32.mxu0 0.0
    %774 = vmatmul.mubr.f32.gmra.mrb[0].mxu0 %v707
    %v775 = vpop.f32.mrb[0].mxu0
    %v776 = vadd.f32 0.0, %v775
    %v777 = vpop.f32.mrb[0].mxu0
    %778 = vdwg.mxu0
    %v780 = vrot.slane %v776, 2
    %v782 = vadd.f32 %v141, %v780
    %v783 = vtanh.pop %v782
    %784 = vst.msk [vmem:[#allocation2 + $0x8] sm:$0xc0] %vm467, %v783
    %785 = vst.msk [vmem:[#allocation3 - $0x6] sm:$0xc0] %vm467, %v783
    %v786 = vld [vmem:[#allocation2] sm:$0xff]
    %v787 = vld [vmem:[#allocation2 + $0x8] sm:$0xff]
    %v788 = vld [vmem:[%s6] sm:$0xff]
    %v789 = vld [vmem:[%s6 + $0x8] sm:$0xff]
    %v790 = vld [vmem:[%s6 + $0x10] sm:$0xff]
    %v791 = vld [vmem:[%s6 + $0x18] sm:$0xff]
    %v792 = vld [vmem:[%s7] sm:$0x1]
    %v794 = vlaneseq
    %v795 = vshrl.u32 %v794, 7
    %v796 = vsub.s32 0, %v795
    %v797 = vrot.slane %v792, %v796
    %v800 = vsel %vm149, %v786, 0
    %v803 = vsel %vm149, %v787, 0
    %805 = vmatprep.subr.mxu0 0.0
    %806 = vmatpush1.msra.mxu0 %v788
    %807 = vmatprep.subr.mxu0 0.0
    %808 = vmatpush1.msra.mxu0 %v789
    %809 = vmatprep.subr.mxu0 0.0
    %810 = vmatpush1.msra.mxu0 %v790
    %811 = vmatprep.subr.mxu0 0.0
    %812 = vmatpush1.msra.mxu0 %v791
    %813 = vmatprep.subr.mxu0 0.0
    %814 = vmatpush1.msra.mxu0 0.0
    %815 = vmatprep.subr.mxu0 0.0
    %816 = vmatpush1.msra.mxu0 0.0
    %817 = vmatprep.subr.mxu0 0.0
    %818 = vmatpush1.msra.mxu0 0.0
    %819 = vmatprep.subr.mxu0 0.0
    %820 = vmatpush1.msra.mxu0 0.0
    %821 = vmatprep.subr.mxu0 0.0
    %822 = vmatpush1.msra.mxu0 0.0
    %823 = vmatprep.subr.mxu0 0.0
    %824 = vmatpush1.msra.mxu0 0.0
    %825 = vmatprep.subr.mxu0 0.0
    %826 = vmatpush1.msra.mxu0 0.0
    %827 = vmatprep.subr.mxu0 0.0
    %828 = vmatpush1.msra.mxu0 0.0
    %829 = vmatprep.subr.mxu0 0.0
    %830 = vmatpush1.msra.mxu0 0.0
    %831 = vmatprep.subr.mxu0 0.0
    %832 = vmatpush1.msra.mxu0 0.0
    %833 = vmatprep.subr.mxu0 0.0
    %834 = vmatpush1.msra.mxu0 0.0
    %835 = vmatprep.subr.mxu0 0.0
    %836 = vmatpush1.msra.mxu0 0.0
    %837 = vmatprep.subr.mxu0 0.0
    %838 = vmatpush1.msra.mxu0 0.0
    %839 = vmatprep.subr.mxu0 0.0
    %840 = vmatpush1.msra.mxu0 0.0
    %841 = vmatprep.subr.mxu0 0.0
    %842 = vmatpush1.msra.mxu0 0.0
    %843 = vmatprep.subr.mxu0 0.0
    %844 = vmatpush1.msra.mxu0 0.0
    %845 = vmatprep.subr.mxu0 0.0
    %846 = vmatpush1.msra.mxu0 0.0
    %847 = vmatprep.subr.mxu0 0.0
    %848 = vmatpush1.msra.mxu0 0.0
    %849 = vmatprep.subr.mxu0 0.0
    %850 = vmatpush1.msra.mxu0 0.0
    %851 = vmatprep.subr.mxu0 0.0
    %852 = vmatpush1.msra.mxu0 0.0
    %853 = vmatprep.subr.mxu0 0.0
    %854 = vmatpush1.msra.mxu0 0.0
    %855 = vmatprep.subr.mxu0 0.0
    %856 = vmatpush1.msra.mxu0 0.0
    %857 = vmatprep.subr.mxu0 0.0
    %858 = vmatpush1.msra.mxu0 0.0
    %859 = vmatprep.subr.mxu0 0.0
    %860 = vmatpush1.msra.mxu0 0.0
    %861 = vmatprep.subr.mxu0 0.0
    %862 = vmatpush1.msra.mxu0 0.0
    %863 = vmatprep.subr.mxu0 0.0
    %864 = vmatpush1.msra.mxu0 0.0
    %865 = vmatprep.subr.mxu0 0.0
    %866 = vmatpush1.msra.mxu0 0.0
    %867 = vmatprep.subr.mxu0 0.0
    %868 = vmatpush1.msra.mxu0 0.0
    %869 = vmatprep.mubr.f32.mxu0 0.0
    %870 = vmatmul.mubr.f32.gmra.mrb[0].mxu0 %v800
    %v871 = vpop.f32.mrb[0].mxu0
    %v872 = vadd.f32 %v797, %v871
    %v873 = vpop.f32.mrb[0].mxu0
    %874 = vmatprep.mubr.f32.mxu0 0.0
    %875 = vmatmul.mubr.f32.gmra.mrb[0].mxu0 %v803
    %v876 = vpop.f32.mrb[0].mxu0
    %v877 = vadd.f32 %v797, %v876
    %v878 = vpop.f32.mrb[0].mxu0
    %879 = vdwg.mxu0
    %880 = vst.msk [vmem:[%s8] sm:$0xff] %vm58, %v872
    %881 = vst.msk [vmem:[%s8 + $0x8] sm:$0xff] %vm58, %v877
    // Predicated region
    $region34: #{simple_rnn_forward.1} parent=1 // pred_check
      _
    $region35: #{simple_rnn_forward.1} parent=1 // pred_check_branch
      %883 = sbr.rel (0) target = $region37
    $region36: #{simple_rnn_forward.1} parent=1 // pred_region
      _
    $region37: #{simple_rnn_forward.1} parent=1 // pred_fallthru
      _
    // Predicated region
    $region38: #{simple_rnn_forward.1} parent=1 // pred_check
      _
    $region39: #{simple_rnn_forward.1} parent=1 // pred_check_branch
      %885 = sbr.rel (0) target = $region41
    $region40: #{simple_rnn_forward.1} parent=1 // pred_region
      %s887 = ssub.s32 32, 32
      %888 = vsyncadd [#allocation4], %s887
      %s890 = sshll.u32 [#allocation3], 4
      %s891 = int_to_ptr.vmem [resolvable:$true] %s890
      %893 = dma.vmem_to_hbm [thread:$0]  %s891, 32, %s9, [#allocation4]
    $region41: #{simple_rnn_forward.1} parent=1 // pred_fallthru
      _
    // Predicated region
    $region42: #{simple_rnn_forward.1} parent=1 // pred_check
      _
    $region43: #{simple_rnn_forward.1} parent=1 // pred_check_branch
      %895 = sbr.rel (0) target = $region45
    $region44: #{simple_rnn_forward.1} parent=1 // pred_region
      _
    $region45: #{simple_rnn_forward.1} parent=1 // pred_fallthru
      _
    // Predicated region
    $region46: #{simple_rnn_forward.1} parent=1 // pred_check
      _
    $region47: #{simple_rnn_forward.1} parent=1 // pred_check_branch
      %897 = sbr.rel (0) target = $region49
    $region48: #{simple_rnn_forward.1} parent=1 // pred_region
      %898 = dma.done [#allocation4], 32
    $region49: #{simple_rnn_forward.1} parent=1 // pred_fallthru
      _
    %899 = vsyncpa [#allocation4], 1

</llo_original>
